<compile_context>
chip_gen: v5e
topology: v5e:2x2
jax: 0.10.0
libtpu: 0.0.40
codegen_flags: <defaults>
</compile_context>

<pallas_src>
import functools

import jax
import jax.numpy as jnp
from jax.experimental import pallas as pl
from jax.experimental.pallas import tpu as pltpu

SELU_ALPHA = 1.6732632423543772
SELU_SCALE = 1.0507009873554805


def _selu(x):
    # torch.nn.SELU: scale * (max(0,x) + min(0, alpha*(exp(x)-1)))
    return SELU_SCALE * jnp.where(x > 0, x, SELU_ALPHA * (jnp.exp(x) - 1.0))


def _noconvnet_kernel(x_ref, w1_ref, b1_ref, w2_ref, b2_ref, wg_ref, bg_ref,
                      w3_ref, b3_ref, w4_ref, b4_ref, out_ref,
                      *, graphs_per_block, nodes_per_graph):
    gb, n = graphs_per_block, nodes_per_graph
    h_dim = w1_ref.shape[1]

    x = x_ref[...]                                                # (gb*n, C) bf16

    # fc1 + SELU : (gb*n, C) @ (C, H) -> (gb*n, H)
    h = jnp.dot(x, w1_ref[...], preferred_element_type=jnp.float32) + b1_ref[...]
    h = _selu(h).astype(jnp.bfloat16)

    # fc2 + SELU : (gb*n, H) @ (H, H) -> (gb*n, H)
    h = jnp.dot(h, w2_ref[...], preferred_element_type=jnp.float32) + b2_ref[...]
    hb = _selu(h).astype(jnp.bfloat16)                            # (gb*n, H)

    # Attention gate on the post-SELU features (cannot fuse into fc2's weight:
    # SELU sits between fc2 and the gate projection).
    gate = (jnp.dot(hb, wg_ref[...], preferred_element_type=jnp.float32)
            + bg_ref[0, 0])                                       # (gb*n, 1)

    # Per-graph softmax over the node axis.
    gate = gate.reshape(gb, n, 1)
    m = jnp.max(gate, axis=1, keepdims=True)                      # (gb, 1, 1)
    e = jnp.exp(gate - m)                                         # (gb, n, 1)
    denom = jnp.sum(e, axis=1, keepdims=True)                     # (gb, 1, 1)
    alpha = (e * pl.reciprocal(denom, approx=True)).astype(jnp.bfloat16)

    # Weighted readout as an MXU contraction: (gb,1,n) @ (gb,n,H) -> (gb,1,H)
    hg = hb.reshape(gb, n, h_dim)
    pooled = jax.lax.dot_general(
        alpha, hg, (((1,), (1,)), ((0,), (0,))),
        preferred_element_type=jnp.float32)                       # (gb, 1, H)
    pooled = pooled.reshape(gb, h_dim).astype(jnp.bfloat16)       # (gb, H)

    # fc3 + SELU : (gb, H) @ (H, H//2) -> (gb, H//2)
    h3 = _selu(jnp.dot(pooled, w3_ref[...], preferred_element_type=jnp.float32)
               + b3_ref[...]).astype(jnp.bfloat16)

    # fc4 + sigmoid : (gb, H//2) @ (H//2, 1) -> (gb, 1)
    logit = (jnp.dot(h3, w4_ref[...], preferred_element_type=jnp.float32)
             + b4_ref[0, 0])
    out_ref[...] = jax.nn.sigmoid(logit)


def noconvnet_forward(x, params, *, graphs_per_block=4):
    """x: (B, N, C) node features for B graphs of N nodes each. Returns (B, 1)."""
    w1, b1, w2, b2, wg, bg, w3, b3, w4, b4 = params
    B, N, C = x.shape
    H = w1.shape[1]
    GB = graphs_per_block
    assert B % GB == 0, "batch of graphs must be divisible by graphs_per_block"
    n_blocks = B // GB

    # bf16 matmul operands (f32 accumulation in-kernel); biases stay f32.
    xb = x.reshape(B * N, C).astype(jnp.bfloat16)
    w1b, w2b, wgb, w3b, w4b = (w.astype(jnp.bfloat16) for w in (w1, w2, wg, w3, w4))

    def vmem_full(shape):
        # Full-array VMEM block, constant block index -> stays resident across grid.
        return pl.BlockSpec(shape, lambda i: (0,) * len(shape))

    smem = pl.BlockSpec(memory_space=pltpu.MemorySpace.SMEM)

    in_specs = [
        pl.BlockSpec((GB * N, C), lambda i: (i, 0)),   # node-feature block: GB graphs
        vmem_full(w1b.shape), vmem_full(b1.shape),
        vmem_full(w2b.shape), vmem_full(b2.shape),
        vmem_full(wgb.shape), smem,                    # bg (1,1) scalar -> SMEM
        vmem_full(w3b.shape), vmem_full(b3.shape),
        vmem_full(w4b.shape), smem,                    # b4 (1,1) scalar -> SMEM
    ]
    out_spec = pl.BlockSpec((None, GB, 1), lambda i: (i, 0, 0))

    # Advisory cost estimate (matmuls + pooled contraction; exp in SELU/softmax/sigmoid).
    flops = 2 * B * N * (C * H + H * H + H + H) + 2 * B * (H * (H // 2) + (H // 2))
    transcendentals = B * N * (2 * H + 1) + B * (H // 2 + 1)
    bytes_accessed = int(
        xb.size * 2
        + sum(int(a.size) * 2 for a in (w1b, w2b, wgb, w3b, w4b))
        + sum(int(a.size) * 4 for a in (b1, b2, bg, b3, b4))
        + B * 4)

    kernel = functools.partial(_noconvnet_kernel,
                               graphs_per_block=GB, nodes_per_graph=N)

    out = pl.pallas_call(
        kernel,
        grid=(n_blocks,),
        in_specs=in_specs,
        out_specs=out_spec,
        out_shape=jax.ShapeDtypeStruct((n_blocks, GB, 1), jnp.float32),
        compiler_params=pltpu.CompilerParams(
            dimension_semantics=("parallel",)),
        cost_estimate=pl.CostEstimate(flops=int(flops),
                                      transcendentals=int(transcendentals),
                                      bytes_accessed=bytes_accessed),
    )(xb, w1b, b1, w2b, b2, wgb, bg, w3b, b3, w4b, b4)
    return out.reshape(B, 1)


def init_linear(key, fan_in, fan_out):
    """Deterministic torch.nn.Linear-style init; weight stored as (in, out)."""
    kw, kb = jax.random.split(key)
    bound = 1.0 / jnp.sqrt(jnp.float32(fan_in))
    w = jax.random.uniform(kw, (fan_in, fan_out), jnp.float32, -bound, bound)
    b = jax.random.uniform(kb, (1, fan_out), jnp.float32, -bound, bound)
    return w, b


def init_params(key, in_channels, n_hidden=64):
    k1, k2, kg, k3, k4 = jax.random.split(key, 5)
    w1, b1 = init_linear(k1, in_channels, n_hidden)
    w2, b2 = init_linear(k2, n_hidden, n_hidden)
    wg, bg = init_linear(kg, n_hidden, 1)            # pooling gate
    w3, b3 = init_linear(k3, n_hidden, n_hidden // 2)
    w4, b4 = init_linear(k4, n_hidden // 2, 1)
    return (w1, b1, w2, b2, wg, bg, w3, b3, w4, b4)


def reference_forward(x, params):
    """Pure-JAX f32 reference (mirrors the PyTorch forward, batched over graphs)."""
    w1, b1, w2, b2, wg, bg, w3, b3, w4, b4 = params
    x = x.astype(jnp.float32)                       # (B, N, C)
    h = _selu(x @ w1 + b1)                          # (B, N, H)
    h = _selu(h @ w2 + b2)                          # (B, N, H)
    gate = h @ wg + bg                              # (B, N, 1)
    alpha = jax.nn.softmax(gate, axis=1)
    pooled = jnp.sum(alpha * h, axis=1)             # (B, H)
    h3 = _selu(pooled @ w3 + b3)                    # (B, H//2)
    return jax.nn.sigmoid(h3 @ w4 + b4)             # (B, 1)


if __name__ == "__main__":
    # TODO(synk): DGL batched graphs with variable node counts would need a
    # per-graph segment softmax with padding masks; here every graph has a
    # fixed N_NODES nodes.
    B_GRAPHS = 8
    GRAPHS_PER_BLOCK = 4
    N_NODES = 16
    IN_CHANNELS = 8
    N_HIDDEN = 64

    key = jax.random.PRNGKey(0)
    kx, kp = jax.random.split(key)
    x = jax.random.normal(kx, (B_GRAPHS, N_NODES, IN_CHANNELS), jnp.float32)
    params = init_params(kp, IN_CHANNELS, N_HIDDEN)

    out = noconvnet_forward(x, params, graphs_per_block=GRAPHS_PER_BLOCK)
    out = jax.block_until_ready(out)

    ref = reference_forward(x, params)
    assert out.shape == (B_GRAPHS, 1)
    # bf16 matmul operands (f32 accumulation) => loosened tolerance vs f32 ref.
    assert jnp.allclose(out, ref, atol=2e-2, rtol=2e-2), (out, ref)
    print("KERNEL_OK")
</pallas_src>

<mosaic_0001>
module attributes {stable_mosaic.version = 11 : i64} {
  func.func @_noconvnet_kernel(%arg0: i32, %arg1: memref<64x8xbf16, #tpu.memory_space<vmem>>, %arg2: memref<8x64xbf16, #tpu.memory_space<vmem>>, %arg3: memref<1x64xf32, #tpu.memory_space<vmem>>, %arg4: memref<64x64xbf16, #tpu.memory_space<vmem>>, %arg5: memref<1x64xf32, #tpu.memory_space<vmem>>, %arg6: memref<64x1xbf16, #tpu.memory_space<vmem>>, %arg7: memref<1x1xf32, #tpu.memory_space<smem>>, %arg8: memref<64x32xbf16, #tpu.memory_space<vmem>>, %arg9: memref<1x32xf32, #tpu.memory_space<vmem>>, %arg10: memref<32x1xbf16, #tpu.memory_space<vmem>>, %arg11: memref<1x1xf32, #tpu.memory_space<smem>>, %arg12: memref<1x4x1xf32, #tpu.memory_space<vmem>>) attributes {dimension_semantics = [#tpu.dimension_semantics<parallel>], iteration_bounds = array<i64: 2>, scalar_prefetch = 0 : i64, scratch_operands = 0 : i64, tpu.core_type = #tpu.core_type<tc>, window_params = [{transform_indices = @transform_0, window_bounds = array<i64: 64, 8>}, {pipeline_mode = #tpu.pipeline_mode<synchronous>, transform_indices = @transform_1, window_bounds = array<i64: 8, 64>}, {pipeline_mode = #tpu.pipeline_mode<synchronous>, transform_indices = @transform_2, window_bounds = array<i64: 1, 64>}, {pipeline_mode = #tpu.pipeline_mode<synchronous>, transform_indices = @transform_3, window_bounds = array<i64: 64, 64>}, {pipeline_mode = #tpu.pipeline_mode<synchronous>, transform_indices = @transform_4, window_bounds = array<i64: 1, 64>}, {pipeline_mode = #tpu.pipeline_mode<synchronous>, transform_indices = @transform_5, window_bounds = array<i64: 64, 1>}, {transform_indices = @transform_6, window_bounds = array<i64: 1, 1>}, {pipeline_mode = #tpu.pipeline_mode<synchronous>, transform_indices = @transform_7, window_bounds = array<i64: 64, 32>}, {pipeline_mode = #tpu.pipeline_mode<synchronous>, transform_indices = @transform_8, window_bounds = array<i64: 1, 32>}, {pipeline_mode = #tpu.pipeline_mode<synchronous>, transform_indices = @transform_9, window_bounds = array<i64: 32, 1>}, {transform_indices = @transform_10, window_bounds = array<i64: 1, 1>}, {transform_indices = @transform_11, window_bounds = array<i64: 1, 4, 1>}]} {
    %c0 = arith.constant 0 : index
    %c0_0 = arith.constant 0 : index
    %0 = vector.load %arg1[%c0, %c0_0] : memref<64x8xbf16, #tpu.memory_space<vmem>>, vector<64x8xbf16>
    %c0_1 = arith.constant 0 : index
    %c0_2 = arith.constant 0 : index
    %1 = vector.load %arg2[%c0_1, %c0_2] : memref<8x64xbf16, #tpu.memory_space<vmem>>, vector<8x64xbf16>
    %cst = arith.constant dense<0.000000e+00> : vector<64x64xf32>
    %2 = tpu.matmul %0, %1, %cst {dimension_numbers = #tpu.dot_dimension_numbers<[1], [0], [0], [1], [0, 0, 1, 1], [], []>} : vector<64x8xbf16>, vector<8x64xbf16>, vector<64x64xf32> -> vector<64x64xf32>
    %c0_3 = arith.constant 0 : index
    %c0_4 = arith.constant 0 : index
    %3 = vector.load %arg3[%c0_3, %c0_4] : memref<1x64xf32, #tpu.memory_space<vmem>>, vector<1x64xf32>
    %4 = vector.broadcast %3 : vector<1x64xf32> to vector<64x64xf32>
    %5 = arith.addf %2, %4 : vector<64x64xf32>
    %cst_5 = arith.constant 0.000000e+00 : f32
    %6 = vector.broadcast %cst_5 : f32 to vector<64x64xf32>
    %7 = arith.cmpf ogt, %5, %6 : vector<64x64xf32>
    %8 = math.exp %5 : vector<64x64xf32>
    %cst_6 = arith.constant 1.000000e+00 : f32
    %9 = vector.broadcast %cst_6 : f32 to vector<64x64xf32>
    %10 = arith.subf %8, %9 : vector<64x64xf32>
    %cst_7 = arith.constant 1.67326319 : f32
    %11 = vector.broadcast %cst_7 : f32 to vector<64x64xf32>
    %12 = arith.mulf %11, %10 : vector<64x64xf32>
    %13 = arith.select %7, %5, %12 : vector<64x64xi1>, vector<64x64xf32>
    %cst_8 = arith.constant 1.05070102 : f32
    %14 = vector.broadcast %cst_8 : f32 to vector<64x64xf32>
    %15 = arith.mulf %14, %13 : vector<64x64xf32>
    %16 = arith.truncf %15 : vector<64x64xf32> to vector<64x64xbf16>
    %c0_9 = arith.constant 0 : index
    %c0_10 = arith.constant 0 : index
    %17 = vector.load %arg4[%c0_9, %c0_10] : memref<64x64xbf16, #tpu.memory_space<vmem>>, vector<64x64xbf16>
    %cst_11 = arith.constant dense<0.000000e+00> : vector<64x64xf32>
    %18 = tpu.matmul %16, %17, %cst_11 {dimension_numbers = #tpu.dot_dimension_numbers<[1], [0], [0], [1], [0, 0, 1, 1], [], []>} : vector<64x64xbf16>, vector<64x64xbf16>, vector<64x64xf32> -> vector<64x64xf32>
    %c0_12 = arith.constant 0 : index
    %c0_13 = arith.constant 0 : index
    %19 = vector.load %arg5[%c0_12, %c0_13] : memref<1x64xf32, #tpu.memory_space<vmem>>, vector<1x64xf32>
    %20 = vector.broadcast %19 : vector<1x64xf32> to vector<64x64xf32>
    %21 = arith.addf %18, %20 : vector<64x64xf32>
    %cst_14 = arith.constant 0.000000e+00 : f32
    %22 = vector.broadcast %cst_14 : f32 to vector<64x64xf32>
    %23 = arith.cmpf ogt, %21, %22 : vector<64x64xf32>
    %24 = math.exp %21 : vector<64x64xf32>
    %cst_15 = arith.constant 1.000000e+00 : f32
    %25 = vector.broadcast %cst_15 : f32 to vector<64x64xf32>
    %26 = arith.subf %24, %25 : vector<64x64xf32>
    %cst_16 = arith.constant 1.67326319 : f32
    %27 = vector.broadcast %cst_16 : f32 to vector<64x64xf32>
    %28 = arith.mulf %27, %26 : vector<64x64xf32>
    %29 = arith.select %23, %21, %28 : vector<64x64xi1>, vector<64x64xf32>
    %cst_17 = arith.constant 1.05070102 : f32
    %30 = vector.broadcast %cst_17 : f32 to vector<64x64xf32>
    %31 = arith.mulf %30, %29 : vector<64x64xf32>
    %32 = arith.truncf %31 : vector<64x64xf32> to vector<64x64xbf16>
    %c0_18 = arith.constant 0 : index
    %c0_19 = arith.constant 0 : index
    %33 = vector.load %arg6[%c0_18, %c0_19] : memref<64x1xbf16, #tpu.memory_space<vmem>>, vector<64x1xbf16>
    %cst_20 = arith.constant dense<0.000000e+00> : vector<64x1xf32>
    %34 = tpu.matmul %32, %33, %cst_20 {dimension_numbers = #tpu.dot_dimension_numbers<[1], [0], [0], [1], [0, 0, 1, 1], [], []>} : vector<64x64xbf16>, vector<64x1xbf16>, vector<64x1xf32> -> vector<64x1xf32>
    %c0_21 = arith.constant 0 : index
    %c0_22 = arith.constant 0 : index
    %35 = memref.load %arg7[%c0_21, %c0_22] : memref<1x1xf32, #tpu.memory_space<smem>>
    %36 = vector.broadcast %35 : f32 to vector<64x1xf32>
    %37 = arith.addf %34, %36 : vector<64x1xf32>
    %38 = vector.shape_cast %37 : vector<64x1xf32> to vector<4x16x1xf32>
    %cst_23 = arith.constant dense<0xFF800000> : vector<4x1xf32>
    %39 = vector.multi_reduction <maximumf>, %38, %cst_23 [1] : vector<4x16x1xf32> to vector<4x1xf32>
    %40 = vector.shape_cast %39 : vector<4x1xf32> to vector<4x1x1xf32>
    %41 = vector.broadcast %40 : vector<4x1x1xf32> to vector<4x16x1xf32>
    %42 = arith.subf %38, %41 : vector<4x16x1xf32>
    %43 = math.exp %42 : vector<4x16x1xf32>
    %cst_24 = arith.constant dense<0.000000e+00> : vector<4x1xf32>
    %44 = vector.multi_reduction <add>, %43, %cst_24 [1] : vector<4x16x1xf32> to vector<4x1xf32>
    %45 = vector.shape_cast %44 : vector<4x1xf32> to vector<4x1x1xf32>
    %46 = tpu.reciprocal %45 {approx = true} : vector<4x1x1xf32> -> vector<4x1x1xf32>
    %47 = vector.broadcast %46 : vector<4x1x1xf32> to vector<4x16x1xf32>
    %48 = arith.mulf %43, %47 : vector<4x16x1xf32>
    %49 = arith.truncf %48 : vector<4x16x1xf32> to vector<4x16x1xbf16>
    %50 = vector.shape_cast %32 : vector<64x64xbf16> to vector<4x16x64xbf16>
    %cst_25 = arith.constant dense<0.000000e+00> : vector<4x1x64xf32>
    %51 = tpu.matmul %49, %50, %cst_25 {dimension_numbers = #tpu.dot_dimension_numbers<[1], [1], [2], [2], [0, 0, 0, 2, 1, 2], [0], [0]>} : vector<4x16x1xbf16>, vector<4x16x64xbf16>, vector<4x1x64xf32> -> vector<4x1x64xf32>
    %52 = vector.shape_cast %51 : vector<4x1x64xf32> to vector<4x64xf32>
    %53 = arith.truncf %52 : vector<4x64xf32> to vector<4x64xbf16>
    %c0_26 = arith.constant 0 : index
    %c0_27 = arith.constant 0 : index
    %54 = vector.load %arg8[%c0_26, %c0_27] : memref<64x32xbf16, #tpu.memory_space<vmem>>, vector<64x32xbf16>
    %cst_28 = arith.constant dense<0.000000e+00> : vector<4x32xf32>
    %55 = tpu.matmul %53, %54, %cst_28 {dimension_numbers = #tpu.dot_dimension_numbers<[1], [0], [0], [1], [0, 0, 1, 1], [], []>} : vector<4x64xbf16>, vector<64x32xbf16>, vector<4x32xf32> -> vector<4x32xf32>
    %c0_29 = arith.constant 0 : index
    %c0_30 = arith.constant 0 : index
    %56 = vector.load %arg9[%c0_29, %c0_30] : memref<1x32xf32, #tpu.memory_space<vmem>>, vector<1x32xf32>
    %57 = vector.broadcast %56 : vector<1x32xf32> to vector<4x32xf32>
    %58 = arith.addf %55, %57 : vector<4x32xf32>
    %cst_31 = arith.constant 0.000000e+00 : f32
    %59 = vector.broadcast %cst_31 : f32 to vector<4x32xf32>
    %60 = arith.cmpf ogt, %58, %59 : vector<4x32xf32>
    %61 = math.exp %58 : vector<4x32xf32>
    %cst_32 = arith.constant 1.000000e+00 : f32
    %62 = vector.broadcast %cst_32 : f32 to vector<4x32xf32>
    %63 = arith.subf %61, %62 : vector<4x32xf32>
    %cst_33 = arith.constant 1.67326319 : f32
    %64 = vector.broadcast %cst_33 : f32 to vector<4x32xf32>
    %65 = arith.mulf %64, %63 : vector<4x32xf32>
    %66 = arith.select %60, %58, %65 : vector<4x32xi1>, vector<4x32xf32>
    %cst_34 = arith.constant 1.05070102 : f32
    %67 = vector.broadcast %cst_34 : f32 to vector<4x32xf32>
    %68 = arith.mulf %67, %66 : vector<4x32xf32>
    %69 = arith.truncf %68 : vector<4x32xf32> to vector<4x32xbf16>
    %c0_35 = arith.constant 0 : index
    %c0_36 = arith.constant 0 : index
    %70 = vector.load %arg10[%c0_35, %c0_36] : memref<32x1xbf16, #tpu.memory_space<vmem>>, vector<32x1xbf16>
    %cst_37 = arith.constant dense<0.000000e+00> : vector<4x1xf32>
    %71 = tpu.matmul %69, %70, %cst_37 {dimension_numbers = #tpu.dot_dimension_numbers<[1], [0], [0], [1], [0, 0, 1, 1], [], []>} : vector<4x32xbf16>, vector<32x1xbf16>, vector<4x1xf32> -> vector<4x1xf32>
    %c0_38 = arith.constant 0 : index
    %c0_39 = arith.constant 0 : index
    %72 = memref.load %arg11[%c0_38, %c0_39] : memref<1x1xf32, #tpu.memory_space<smem>>
    %73 = vector.broadcast %72 : f32 to vector<4x1xf32>
    %74 = arith.addf %71, %73 : vector<4x1xf32>
    %75 = arith.negf %74 : vector<4x1xf32>
    %76 = math.exp %75 : vector<4x1xf32>
    %cst_40 = arith.constant 1.000000e+00 : f32
    %77 = vector.broadcast %cst_40 : f32 to vector<4x1xf32>
    %78 = arith.addf %77, %76 : vector<4x1xf32>
    %79 = arith.divf %77, %78 : vector<4x1xf32>
    %c0_41 = arith.constant 0 : index
    %c0_42 = arith.constant 0 : index
    %c0_43 = arith.constant 0 : index
    %80 = vector.load %arg12[%c0_41, %c0_42, %c0_43] : memref<1x4x1xf32, #tpu.memory_space<vmem>>, vector<1x4x1xf32>
    %81 = vector.shape_cast %80 : vector<1x4x1xf32> to vector<4x1xf32>
    %82 = vector.shape_cast %79 : vector<4x1xf32> to vector<1x4x1xf32>
    tpu.vector_store %arg12[%c0_41, %c0_42, %c0_43], %82 {strides = array<i32>} : memref<1x4x1xf32, #tpu.memory_space<vmem>>, vector<1x4x1xf32>,
    return
  }
  func.func @transform_0(%arg0: i32) -> (i32, i32) {
    %c0_i32 = arith.constant 0 : i32
    %c0_i32_0 = arith.constant 0 : i32
    return %arg0, %c0_i32 : i32, i32
  }
  func.func @transform_1(%arg0: i32) -> (i32, i32) {
    %c0_i32 = arith.constant 0 : i32
    %c0_i32_0 = arith.constant 0 : i32
    %c0_i32_1 = arith.constant 0 : i32
    return %c0_i32, %c0_i32_0 : i32, i32
  }
  func.func @transform_2(%arg0: i32) -> (i32, i32) {
    %c0_i32 = arith.constant 0 : i32
    %c0_i32_0 = arith.constant 0 : i32
    %c0_i32_1 = arith.constant 0 : i32
    return %c0_i32, %c0_i32_0 : i32, i32
  }
  func.func @transform_3(%arg0: i32) -> (i32, i32) {
    %c0_i32 = arith.constant 0 : i32
    %c0_i32_0 = arith.constant 0 : i32
    %c0_i32_1 = arith.constant 0 : i32
    return %c0_i32, %c0_i32_0 : i32, i32
  }
  func.func @transform_4(%arg0: i32) -> (i32, i32) {
    %c0_i32 = arith.constant 0 : i32
    %c0_i32_0 = arith.constant 0 : i32
    %c0_i32_1 = arith.constant 0 : i32
    return %c0_i32, %c0_i32_0 : i32, i32
  }
  func.func @transform_5(%arg0: i32) -> (i32, i32) {
    %c0_i32 = arith.constant 0 : i32
    %c0_i32_0 = arith.constant 0 : i32
    %c0_i32_1 = arith.constant 0 : i32
    return %c0_i32, %c0_i32_0 : i32, i32
  }
  func.func @transform_6(%arg0: i32) -> (i32, i32) {
    %c0_i32 = arith.constant 0 : i32
    %c0_i32_0 = arith.constant 0 : i32
    %c0_i32_1 = arith.constant 0 : i32
    return %c0_i32, %c0_i32_0 : i32, i32
  }
  func.func @transform_7(%arg0: i32) -> (i32, i32) {
    %c0_i32 = arith.constant 0 : i32
    %c0_i32_0 = arith.constant 0 : i32
    %c0_i32_1 = arith.constant 0 : i32
    return %c0_i32, %c0_i32_0 : i32, i32
  }
  func.func @transform_8(%arg0: i32) -> (i32, i32) {
    %c0_i32 = arith.constant 0 : i32
    %c0_i32_0 = arith.constant 0 : i32
    %c0_i32_1 = arith.constant 0 : i32
    return %c0_i32, %c0_i32_0 : i32, i32
  }
  func.func @transform_9(%arg0: i32) -> (i32, i32) {
    %c0_i32 = arith.constant 0 : i32
    %c0_i32_0 = arith.constant 0 : i32
    %c0_i32_1 = arith.constant 0 : i32
    return %c0_i32, %c0_i32_0 : i32, i32
  }
  func.func @transform_10(%arg0: i32) -> (i32, i32) {
    %c0_i32 = arith.constant 0 : i32
    %c0_i32_0 = arith.constant 0 : i32
    %c0_i32_1 = arith.constant 0 : i32
    return %c0_i32, %c0_i32_0 : i32, i32
  }
  func.func @transform_11(%arg0: i32) -> (i32, i32, i32) {
    %c0_i32 = arith.constant 0 : i32
    %c0_i32_0 = arith.constant 0 : i32
    %c0_i32_1 = arith.constant 0 : i32
    return %arg0, %c0_i32, %c0_i32_0 : i32, i32, i32
  }
}

</mosaic_0001>

<llo_original>
// kernel: tpu_custom_call.1
$region0: #{tpu_custom_call.1}
  #allocation0 [shape = 'u32[]', space=smem, size = 0x4, offset = 0x4, fixed_abs, tag = 'smem constant byte address 0x4 - core index']
  #allocation1 [shape = 'u32[72,128]{1,0:T(1,128)}', space=vmem, size = 0x9000, scoped, tag = 'internal scratch']
  #allocation2 [shape = 'f32[1,1]{1,0:T(1,128)S(6)}', space=smem, size = 0x200, scoped, tag = 'scoped memory for tpu_custom_call.1']
  #allocation3 [shape = 'f32[1,1]{1,0:T(1,128)S(6)}', space=smem, size = 0x200, scoped, tag = 'scoped memory for tpu_custom_call.1']
  %s0 = inlined_call_operand.vmem [shape: bf16[128,8], index: 0, kind: input, shape index: {}]
  %s1 = inlined_call_operand.vmem [shape: bf16[8,64], index: 1, kind: input, shape index: {}]
  %s2 = inlined_call_operand.vmem [shape: f32[1,64], index: 2, kind: input, shape index: {}]
  %s3 = inlined_call_operand.vmem [shape: bf16[64,64], index: 3, kind: input, shape index: {}]
  %s4 = inlined_call_operand.vmem [shape: f32[1,64], index: 4, kind: input, shape index: {}]
  %s5 = inlined_call_operand.vmem [shape: bf16[64,1], index: 5, kind: input, shape index: {}]
  %s6 = inlined_call_operand.<no memory space> [shape: f32[1,1], index: 6, kind: input, shape index: {}]
  %s7 = inlined_call_operand.vmem [shape: bf16[64,32], index: 7, kind: input, shape index: {}]
  %s8 = inlined_call_operand.vmem [shape: f32[1,32], index: 8, kind: input, shape index: {}]
  %s9 = inlined_call_operand.vmem [shape: bf16[32,1], index: 9, kind: input, shape index: {}]
  %s10 = inlined_call_operand.<no memory space> [shape: f32[1,1], index: 10, kind: input, shape index: {}]
  %s11 = inlined_call_operand.vmem [shape: f32[2,4,1], index: 11, kind: output, shape index: {}]
  %s12 = sld [smem:[#allocation0]]
  $region77: #{tpu_custom_call.1} parent=0
    _
  %s14 = ssub.s32 1, %s12
  %s15 = scalar_select 0, %s14, %s12
  %16 = sst [smem:[#allocation2]] %s6
  %17 = sst [smem:[#allocation3]] %s10
  loop: start=0, step=1, limit=4
  $region2: #{tpu_custom_call.1} parent=0 // loop_pre_header
    _
  $region3: #{tpu_custom_call.1} parent=0 // loop_header
    %s19 = sphi 0, %s23
    %p20 = scmp.ge.s32.totalorder %s19, 4
    %s29 = sphi 0, %s31
    %s32 = sphi 0, %s29
    %s33 = sphi 0, %s32
    %s49 = sphi 0, %s33
    %s53 = sphi 0, %s53
    %s55 = sphi 0, %s53
    %s56 = sphi 0, %s55
    %s70 = sphi 0, %s56
    %s74 = sphi 0, %s74
    %s76 = sphi 0, %s74
    %s77 = sphi 0, %s76
    %s91 = sphi 0, %s77
    %s95 = sphi 0, %s95
    %s97 = sphi 0, %s95
    %s98 = sphi 0, %s97
    %s112 = sphi 0, %s98
    %s116 = sphi 0, %s116
    %s118 = sphi 0, %s116
    %s119 = sphi 0, %s118
    %s133 = sphi 0, %s119
    %s137 = sphi 0, %s137
    %s139 = sphi 0, %s137
    %s140 = sphi 0, %s139
    %s154 = sphi 0, %s140
    %s158 = sphi 0, %s158
    %s160 = sphi 0, %s158
    %s161 = sphi 0, %s160
    %s175 = sphi 0, %s161
    %s179 = sphi 0, %s179
    %s181 = sphi 0, %s179
    %s182 = sphi 0, %s181
    %s196 = sphi 0, %s182
    %s200 = sphi 0, %s200
    %s202 = sphi 0, %s200
    %s203 = sphi 0, %s202
    %s217 = sphi 0, %s203
    %s221 = sphi 0, %s221
    %s223 = sphi 0, %s221
    %s224 = sphi 0, %s223
    %s238 = sphi 0, %s224
    %s242 = sphi 0, %s242
    %s244 = sphi 0, %s242
    %s245 = sphi 0, %s244
    %s259 = sphi 0, %s245
    %s265 = sphi 0, %s267
    %s268 = sphi 0, %s265
    %s269 = sphi 0, %s268
    %s285 = sphi 0, %s269
  $region4: #{tpu_custom_call.1} parent=0 // loop_header_branch
    %22 = sbr.rel (%p20) target = $region8
  $region5: #{tpu_custom_call.1} parent=0 // loop_body
    %s24 = ssub.s32 %s19, 1
    %s25 = ssub.s32 %s19, 2
    %s26 = sadd.s32 %s19, 1
    %s27 = ssub.s32 %s19, %s26
    %p28 = scmp.eq.s32.totalorder %s27, 0
    %s30 = sadd.s32 %s29, 1
    %s31 = scalar_select %p28, %s29, %s30
    %p34 = pneg %p28
    %p35 = scmp.eq.s32.totalorder %s19, 1
    %p36 = por %p34, %p35
    %p37 = scmp.ne.s32.totalorder %s29, %s32
    %p38 = scmp.eq.s32.totalorder %s19, 0
    %p39 = por %p37, %p38
    %p40 = scmp.ne.s32.totalorder %s29, %s32
    %p41 = scmp.eq.s32.totalorder %s24, 1
    %p42 = por %p40, %p41
    %p43 = scmp.ne.s32.totalorder %s32, %s33
    %p44 = scmp.eq.s32.totalorder %s24, 0
    %p45 = por %p43, %p44
    %p46 = scmp.ne.s32.totalorder %s32, %s33
    %p47 = scmp.eq.s32.totalorder %s25, 1
    %p48 = por %p46, %p47
    %p50 = scmp.ne.s32.totalorder %s33, %s49
    %p51 = scmp.eq.s32.totalorder %s25, 0
    %p52 = por %p50, %p51
    %s54 = sadd.s32 %s53, 1
    %p57 = scmp.eq.s32.totalorder %s19, 1
    %p58 = scmp.ne.s32.totalorder %s53, %s55
    %p59 = scmp.eq.s32.totalorder %s19, 0
    %p60 = por %p58, %p59
    %p61 = scmp.ne.s32.totalorder %s53, %s55
    %p62 = scmp.eq.s32.totalorder %s24, 1
    %p63 = por %p61, %p62
    %p64 = scmp.ne.s32.totalorder %s55, %s56
    %p65 = scmp.eq.s32.totalorder %s24, 0
    %p66 = por %p64, %p65
    %p67 = scmp.ne.s32.totalorder %s55, %s56
    %p68 = scmp.eq.s32.totalorder %s25, 1
    %p69 = por %p67, %p68
    %p71 = scmp.ne.s32.totalorder %s56, %s70
    %p72 = scmp.eq.s32.totalorder %s25, 0
    %p73 = por %p71, %p72
    %s75 = sadd.s32 %s74, 1
    %p78 = scmp.eq.s32.totalorder %s19, 1
    %p79 = scmp.ne.s32.totalorder %s74, %s76
    %p80 = scmp.eq.s32.totalorder %s19, 0
    %p81 = por %p79, %p80
    %p82 = scmp.ne.s32.totalorder %s74, %s76
    %p83 = scmp.eq.s32.totalorder %s24, 1
    %p84 = por %p82, %p83
    %p85 = scmp.ne.s32.totalorder %s76, %s77
    %p86 = scmp.eq.s32.totalorder %s24, 0
    %p87 = por %p85, %p86
    %p88 = scmp.ne.s32.totalorder %s76, %s77
    %p89 = scmp.eq.s32.totalorder %s25, 1
    %p90 = por %p88, %p89
    %p92 = scmp.ne.s32.totalorder %s77, %s91
    %p93 = scmp.eq.s32.totalorder %s25, 0
    %p94 = por %p92, %p93
    %s96 = sadd.s32 %s95, 1
    %p99 = scmp.eq.s32.totalorder %s19, 1
    %p100 = scmp.ne.s32.totalorder %s95, %s97
    %p101 = scmp.eq.s32.totalorder %s19, 0
    %p102 = por %p100, %p101
    %p103 = scmp.ne.s32.totalorder %s95, %s97
    %p104 = scmp.eq.s32.totalorder %s24, 1
    %p105 = por %p103, %p104
    %p106 = scmp.ne.s32.totalorder %s97, %s98
    %p107 = scmp.eq.s32.totalorder %s24, 0
    %p108 = por %p106, %p107
    %p109 = scmp.ne.s32.totalorder %s97, %s98
    %p110 = scmp.eq.s32.totalorder %s25, 1
    %p111 = por %p109, %p110
    %p113 = scmp.ne.s32.totalorder %s98, %s112
    %p114 = scmp.eq.s32.totalorder %s25, 0
    %p115 = por %p113, %p114
    %s117 = sadd.s32 %s116, 1
    %p120 = scmp.eq.s32.totalorder %s19, 1
    %p121 = scmp.ne.s32.totalorder %s116, %s118
    %p122 = scmp.eq.s32.totalorder %s19, 0
    %p123 = por %p121, %p122
    %p124 = scmp.ne.s32.totalorder %s116, %s118
    %p125 = scmp.eq.s32.totalorder %s24, 1
    %p126 = por %p124, %p125
    %p127 = scmp.ne.s32.totalorder %s118, %s119
    %p128 = scmp.eq.s32.totalorder %s24, 0
    %p129 = por %p127, %p128
    %p130 = scmp.ne.s32.totalorder %s118, %s119
    %p131 = scmp.eq.s32.totalorder %s25, 1
    %p132 = por %p130, %p131
    %p134 = scmp.ne.s32.totalorder %s119, %s133
    %p135 = scmp.eq.s32.totalorder %s25, 0
    %p136 = por %p134, %p135
    %s138 = sadd.s32 %s137, 1
    %p141 = scmp.eq.s32.totalorder %s19, 1
    %p142 = scmp.ne.s32.totalorder %s137, %s139
    %p143 = scmp.eq.s32.totalorder %s19, 0
    %p144 = por %p142, %p143
    %p145 = scmp.ne.s32.totalorder %s137, %s139
    %p146 = scmp.eq.s32.totalorder %s24, 1
    %p147 = por %p145, %p146
    %p148 = scmp.ne.s32.totalorder %s139, %s140
    %p149 = scmp.eq.s32.totalorder %s24, 0
    %p150 = por %p148, %p149
    %p151 = scmp.ne.s32.totalorder %s139, %s140
    %p152 = scmp.eq.s32.totalorder %s25, 1
    %p153 = por %p151, %p152
    %p155 = scmp.ne.s32.totalorder %s140, %s154
    %p156 = scmp.eq.s32.totalorder %s25, 0
    %p157 = por %p155, %p156
    %s159 = sadd.s32 %s158, 1
    %p162 = scmp.eq.s32.totalorder %s19, 1
    %p163 = scmp.ne.s32.totalorder %s158, %s160
    %p164 = scmp.eq.s32.totalorder %s19, 0
    %p165 = por %p163, %p164
    %p166 = scmp.ne.s32.totalorder %s158, %s160
    %p167 = scmp.eq.s32.totalorder %s24, 1
    %p168 = por %p166, %p167
    %p169 = scmp.ne.s32.totalorder %s160, %s161
    %p170 = scmp.eq.s32.totalorder %s24, 0
    %p171 = por %p169, %p170
    %p172 = scmp.ne.s32.totalorder %s160, %s161
    %p173 = scmp.eq.s32.totalorder %s25, 1
    %p174 = por %p172, %p173
    %p176 = scmp.ne.s32.totalorder %s161, %s175
    %p177 = scmp.eq.s32.totalorder %s25, 0
    %p178 = por %p176, %p177
    %s180 = sadd.s32 %s179, 1
    %p183 = scmp.eq.s32.totalorder %s19, 1
    %p184 = scmp.ne.s32.totalorder %s179, %s181
    %p185 = scmp.eq.s32.totalorder %s19, 0
    %p186 = por %p184, %p185
    %p187 = scmp.ne.s32.totalorder %s179, %s181
    %p188 = scmp.eq.s32.totalorder %s24, 1
    %p189 = por %p187, %p188
    %p190 = scmp.ne.s32.totalorder %s181, %s182
    %p191 = scmp.eq.s32.totalorder %s24, 0
    %p192 = por %p190, %p191
    %p193 = scmp.ne.s32.totalorder %s181, %s182
    %p194 = scmp.eq.s32.totalorder %s25, 1
    %p195 = por %p193, %p194
    %p197 = scmp.ne.s32.totalorder %s182, %s196
    %p198 = scmp.eq.s32.totalorder %s25, 0
    %p199 = por %p197, %p198
    %s201 = sadd.s32 %s200, 1
    %p204 = scmp.eq.s32.totalorder %s19, 1
    %p205 = scmp.ne.s32.totalorder %s200, %s202
    %p206 = scmp.eq.s32.totalorder %s19, 0
    %p207 = por %p205, %p206
    %p208 = scmp.ne.s32.totalorder %s200, %s202
    %p209 = scmp.eq.s32.totalorder %s24, 1
    %p210 = por %p208, %p209
    %p211 = scmp.ne.s32.totalorder %s202, %s203
    %p212 = scmp.eq.s32.totalorder %s24, 0
    %p213 = por %p211, %p212
    %p214 = scmp.ne.s32.totalorder %s202, %s203
    %p215 = scmp.eq.s32.totalorder %s25, 1
    %p216 = por %p214, %p215
    %p218 = scmp.ne.s32.totalorder %s203, %s217
    %p219 = scmp.eq.s32.totalorder %s25, 0
    %p220 = por %p218, %p219
    %s222 = sadd.s32 %s221, 1
    %p225 = scmp.eq.s32.totalorder %s19, 1
    %p226 = scmp.ne.s32.totalorder %s221, %s223
    %p227 = scmp.eq.s32.totalorder %s19, 0
    %p228 = por %p226, %p227
    %p229 = scmp.ne.s32.totalorder %s221, %s223
    %p230 = scmp.eq.s32.totalorder %s24, 1
    %p231 = por %p229, %p230
    %p232 = scmp.ne.s32.totalorder %s223, %s224
    %p233 = scmp.eq.s32.totalorder %s24, 0
    %p234 = por %p232, %p233
    %p235 = scmp.ne.s32.totalorder %s223, %s224
    %p236 = scmp.eq.s32.totalorder %s25, 1
    %p237 = por %p235, %p236
    %p239 = scmp.ne.s32.totalorder %s224, %s238
    %p240 = scmp.eq.s32.totalorder %s25, 0
    %p241 = por %p239, %p240
    %s243 = sadd.s32 %s242, 1
    %p246 = scmp.eq.s32.totalorder %s19, 1
    %p247 = scmp.ne.s32.totalorder %s242, %s244
    %p248 = scmp.eq.s32.totalorder %s19, 0
    %p249 = por %p247, %p248
    %p250 = scmp.ne.s32.totalorder %s242, %s244
    %p251 = scmp.eq.s32.totalorder %s24, 1
    %p252 = por %p250, %p251
    %p253 = scmp.ne.s32.totalorder %s244, %s245
    %p254 = scmp.eq.s32.totalorder %s24, 0
    %p255 = por %p253, %p254
    %p256 = scmp.ne.s32.totalorder %s244, %s245
    %p257 = scmp.eq.s32.totalorder %s25, 1
    %p258 = por %p256, %p257
    %p260 = scmp.ne.s32.totalorder %s245, %s259
    %p261 = scmp.eq.s32.totalorder %s25, 0
    %p262 = por %p260, %p261
    %s263 = ssub.s32 %s19, %s26
    %p264 = scmp.eq.s32.totalorder %s263, 0
    %s266 = sadd.s32 %s265, 1
    %s267 = scalar_select %p264, %s265, %s266
    %p270 = pneg %p264
    %p271 = scmp.eq.s32.totalorder %s19, 1
    %p272 = por %p270, %p271
    %p273 = scmp.ne.s32.totalorder %s265, %s268
    %p274 = scmp.eq.s32.totalorder %s19, 0
    %p275 = por %p273, %p274
    %p276 = scmp.ne.s32.totalorder %s265, %s268
    %p277 = scmp.eq.s32.totalorder %s24, 1
    %p278 = por %p276, %p277
    %p279 = scmp.ne.s32.totalorder %s268, %s269
    %p280 = scmp.eq.s32.totalorder %s24, 0
    %p281 = por %p279, %p280
    %p282 = scmp.ne.s32.totalorder %s268, %s269
    %p283 = scmp.eq.s32.totalorder %s25, 1
    %p284 = por %p282, %p283
    %p286 = scmp.ne.s32.totalorder %s269, %s285
    %p287 = scmp.eq.s32.totalorder %s25, 0
    %p288 = por %p286, %p287
    %p289 = scmp.le.s32.totalorder 1, %s19
    %p290 = scmp.lt.s32.totalorder %s19, 3
    %p291 = pnand %p289, %p290
    %p292 = pneg %p291
    // Predicated region
    $region9: #{tpu_custom_call.1} parent=5 // pred_check
      _
    $region10: #{tpu_custom_call.1} parent=5 // pred_check_branch
      %294 = sbr.rel (%p291) target = $region12
    $region11: #{tpu_custom_call.1} parent=5 // pred_region
      %s295 = ssub.s32 %s19, 1
      // Predicated region
      $region13: #{tpu_custom_call.1} parent=11 // pred_check
        %p296 = pneg %p66
      $region14: #{tpu_custom_call.1} parent=11 // pred_check_branch
        %298 = sbr.rel (%p296) target = $region16
      $region15: #{tpu_custom_call.1} parent=11 // pred_region
        _
      $region16: #{tpu_custom_call.1} parent=11 // pred_fallthru
        _
      // Predicated region
      $region17: #{tpu_custom_call.1} parent=11 // pred_check
        %p299 = pneg %p87
      $region18: #{tpu_custom_call.1} parent=11 // pred_check_branch
        %301 = sbr.rel (%p299) target = $region20
      $region19: #{tpu_custom_call.1} parent=11 // pred_region
        _
      $region20: #{tpu_custom_call.1} parent=11 // pred_fallthru
        _
      // Predicated region
      $region21: #{tpu_custom_call.1} parent=11 // pred_check
        %p302 = pneg %p108
      $region22: #{tpu_custom_call.1} parent=11 // pred_check_branch
        %304 = sbr.rel (%p302) target = $region24
      $region23: #{tpu_custom_call.1} parent=11 // pred_region
        _
      $region24: #{tpu_custom_call.1} parent=11 // pred_fallthru
        _
      // Predicated region
      $region25: #{tpu_custom_call.1} parent=11 // pred_check
        %p305 = pneg %p129
      $region26: #{tpu_custom_call.1} parent=11 // pred_check_branch
        %307 = sbr.rel (%p305) target = $region28
      $region27: #{tpu_custom_call.1} parent=11 // pred_region
        _
      $region28: #{tpu_custom_call.1} parent=11 // pred_fallthru
        _
      // Predicated region
      $region29: #{tpu_custom_call.1} parent=11 // pred_check
        %p308 = pneg %p150
      $region30: #{tpu_custom_call.1} parent=11 // pred_check_branch
        %310 = sbr.rel (%p308) target = $region32
      $region31: #{tpu_custom_call.1} parent=11 // pred_region
        _
      $region32: #{tpu_custom_call.1} parent=11 // pred_fallthru
        _
      // Predicated region
      $region33: #{tpu_custom_call.1} parent=11 // pred_check
        %p311 = pneg %p171
      $region34: #{tpu_custom_call.1} parent=11 // pred_check_branch
        %313 = sbr.rel (%p311) target = $region36
      $region35: #{tpu_custom_call.1} parent=11 // pred_region
        _
      $region36: #{tpu_custom_call.1} parent=11 // pred_fallthru
        _
      // Predicated region
      $region37: #{tpu_custom_call.1} parent=11 // pred_check
        %p314 = pneg %p192
      $region38: #{tpu_custom_call.1} parent=11 // pred_check_branch
        %316 = sbr.rel (%p314) target = $region40
      $region39: #{tpu_custom_call.1} parent=11 // pred_region
        _
      $region40: #{tpu_custom_call.1} parent=11 // pred_fallthru
        _
      // Predicated region
      $region41: #{tpu_custom_call.1} parent=11 // pred_check
        %p317 = pneg %p213
      $region42: #{tpu_custom_call.1} parent=11 // pred_check_branch
        %319 = sbr.rel (%p317) target = $region44
      $region43: #{tpu_custom_call.1} parent=11 // pred_region
        _
      $region44: #{tpu_custom_call.1} parent=11 // pred_fallthru
        _
      // Predicated region
      $region45: #{tpu_custom_call.1} parent=11 // pred_check
        %p320 = pneg %p234
      $region46: #{tpu_custom_call.1} parent=11 // pred_check_branch
        %322 = sbr.rel (%p320) target = $region48
      $region47: #{tpu_custom_call.1} parent=11 // pred_region
        _
      $region48: #{tpu_custom_call.1} parent=11 // pred_fallthru
        _
      // Predicated region
      $region49: #{tpu_custom_call.1} parent=11 // pred_check
        %p323 = pneg %p255
      $region50: #{tpu_custom_call.1} parent=11 // pred_check_branch
        %325 = sbr.rel (%p323) target = $region52
      $region51: #{tpu_custom_call.1} parent=11 // pred_region
        _
      $region52: #{tpu_custom_call.1} parent=11 // pred_fallthru
        _
    $region12: #{tpu_custom_call.1} parent=5 // pred_fallthru
      _
    %p326 = scmp.lt.s32.totalorder %s19, 2
    // Predicated region
    $region53: #{tpu_custom_call.1} parent=5 // pred_check
      %p327 = pneg %p326
    $region54: #{tpu_custom_call.1} parent=5 // pred_check_branch
      %329 = sbr.rel (%p327) target = $region56
    $region55: #{tpu_custom_call.1} parent=5 // pred_region
      // Predicated region
      $region57: #{tpu_custom_call.1} parent=55 // pred_check
        %p330 = pneg %p39
      $region58: #{tpu_custom_call.1} parent=55 // pred_check_branch
        %332 = sbr.rel (%p330) target = $region60
      $region59: #{tpu_custom_call.1} parent=55 // pred_region
        %s333 = smul.u32 8, %s19
        %p334 = scmp.lt.s32.totalorder %s333, 15
        %s335 = scalar_select %p334, %s333, 15
        %s336 = smul.addr %s335, 4
        %s337 = scalar_lea.vmem %s0, %s336
        %s338 = smul.u32 8, %s19
      $region60: #{tpu_custom_call.1} parent=55 // pred_fallthru
        _
    $region56: #{tpu_custom_call.1} parent=5 // pred_fallthru
      _
    %p339 = scmp.le.s32.totalorder 1, %s19
    %p340 = scmp.lt.s32.totalorder %s19, 3
    %p341 = pnand %p339, %p340
    %p342 = pneg %p341
    // Predicated region
    $region61: #{tpu_custom_call.1} parent=5 // pred_check
      _
    $region62: #{tpu_custom_call.1} parent=5 // pred_check_branch
      %344 = sbr.rel (%p341) target = $region64
    $region63: #{tpu_custom_call.1} parent=5 // pred_region
      %s345 = ssub.s32 %s19, 1
      %s346 = smul.u32 8, %s24
      %p347 = scmp.lt.s32.totalorder %s346, 15
      %s348 = scalar_select %p347, %s346, 15
      %s349 = smul.addr %s348, 4
      %s350 = scalar_lea.vmem %s0, %s349
      %p351 = pneg %p45
      %p352 = pneg %p42
      %p353 = pneg %p66
      %p354 = pneg %p63
      %p355 = pneg %p87
      %p356 = pneg %p84
      %p357 = pneg %p108
      %p358 = pneg %p105
      %p359 = pneg %p129
      %p360 = pneg %p126
      %p361 = pneg %p150
      %p362 = pneg %p147
      %p363 = pneg %p171
      %p364 = pneg %p168
      %p365 = pneg %p192
      %p366 = pneg %p189
      %p367 = pneg %p213
      %p368 = pneg %p210
      %p369 = pneg %p234
      %p370 = pneg %p231
      %p371 = pneg %p255
      %p372 = pneg %p252
      %p373 = pneg %p281
      %p374 = pneg %p278
      %p375 = scmp.lt.s32.totalorder %s24, 1
      %s376 = scalar_select %p375, %s24, 1
      %s377 = smul.addr %s376, 4
      %s378 = scalar_lea.vmem %s11, %s377
      %s379 = smul.u32 8, %s24
      %p380 = scmp.lt.s32.totalorder %s379, 15
      %s381 = scalar_select %p380, %s379, 15
      %s382 = smul.addr %s381, 4
      %s383 = scalar_lea.vmem %s0, %s382
      %s384 = smul.u32 8, %s24
      %p385 = scmp.lt.s32.totalorder %s24, 1
      %s386 = scalar_select %p385, %s24, 1
      %s387 = smul.addr %s386, 4
      %s388 = scalar_lea.vmem %s11, %s387
      %v390 = vld [vmem:[%s383] sm:$0xf]
      %v391 = vld [vmem:[%s383 + $0x4] sm:$0xf]
      %v392 = vld [vmem:[%s383 + $0x8] sm:$0xf]
      %v393 = vld [vmem:[%s383 + $0xc] sm:$0xf]
      %v394 = vld [vmem:[%s383 + $0x10] sm:$0xf]
      %v395 = vld [vmem:[%s383 + $0x14] sm:$0xf]
      %v396 = vld [vmem:[%s383 + $0x18] sm:$0xf]
      %v397 = vld [vmem:[%s383 + $0x1c] sm:$0xf]
      %v398 = vld [vmem:[%s1] sm:$0xf]
      %v399 = vld [vmem:[%s2] sm:$0x1]
      %v401 = vperm.slane %v399, 0
      %v411 = vunpack.c.l.b16 %v390
      %v412 = vunpack.c.l.b16 %v391
      %v413 = vunpack.c.l.b16 %v392
      %v414 = vunpack.c.l.b16 %v393
      %v415 = vunpack.c.l.b16 %v394
      %v416 = vunpack.c.l.b16 %v395
      %v417 = vunpack.c.l.b16 %v396
      %v418 = vunpack.c.l.b16 %v397
      %v419 = vpack.c.b16 %v412, %v411
      %v420 = vpack.c.b16 %v414, %v413
      %v421 = vpack.c.b16 %v416, %v415
      %v422 = vpack.c.b16 %v418, %v417
      %vm423 = vcmask 64512
      %v425 = vsel %vm423, %v419, 0
      %v428 = vsel %vm423, %v420, 0
      %v431 = vsel %vm423, %v421, 0
      %v434 = vsel %vm423, %v422, 0
      %vm436 = vcmask 1043456
      %v438 = vsel %vm436, %v398, 0
      %440 = vmatpush.bf16.msra.mxu0 0
      %441 = vmatpush.bf16.msra.mxu0 0
      %442 = vmatpush.bf16.msra.mxu0 0
      %443 = vmatpush.bf16.msra.mxu0 0
      %444 = vmatpush.bf16.msra.mxu0 0
      %445 = vmatpush.bf16.msra.mxu0 0
      %446 = vmatpush.bf16.msra.mxu0 0
      %447 = vmatpush.bf16.msra.mxu0 %v438
      %448 = vmatmul.bf16.gmra.mxu0 %v425
      %v449 = vpop.f32.mrf.mxu0
      %v450 = vadd.f32 %v401, %v449
      %v451 = vpop.f32.mrf.mxu0
      %v452 = vadd.f32 %v401, %v451
      %453 = vmatmul.bf16.gmra.mxu0 %v428
      %v454 = vpop.f32.mrf.mxu0
      %v455 = vadd.f32 %v401, %v454
      %v456 = vpop.f32.mrf.mxu0
      %v457 = vadd.f32 %v401, %v456
      %458 = vmatmul.bf16.gmra.mxu0 %v431
      %v459 = vpop.f32.mrf.mxu0
      %v460 = vadd.f32 %v401, %v459
      %v461 = vpop.f32.mrf.mxu0
      %v462 = vadd.f32 %v401, %v461
      %463 = vmatmul.bf16.gmra.mxu0 %v434
      %v464 = vpop.f32.mrf.mxu0
      %v465 = vadd.f32 %v401, %v464
      %v466 = vpop.f32.mrf.mxu0
      %v467 = vadd.f32 %v401, %v466
      %468 = vdwg.mxu0
      %vm469 = vcmp.gt.f32.partialorder %v450, 0.0
      %vm470 = vcmp.gt.f32.partialorder %v452, 0.0
      %vm471 = vcmp.gt.f32.partialorder %v455, 0.0
      %vm472 = vcmp.gt.f32.partialorder %v457, 0.0
      %vm473 = vcmp.gt.f32.partialorder %v460, 0.0
      %vm474 = vcmp.gt.f32.partialorder %v462, 0.0
      %vm475 = vcmp.gt.f32.partialorder %v465, 0.0
      %vm476 = vcmp.gt.f32.partialorder %v467, 0.0
      %v477 = vmul.f32 %v450, 1.442695
      %v478 = vpow.pop %v477
      %v479 = vmul.f32 %v452, 1.442695
      %v480 = vpow.pop %v479
      %v481 = vmul.f32 %v455, 1.442695
      %v482 = vpow.pop %v481
      %v483 = vmul.f32 %v457, 1.442695
      %v484 = vpow.pop %v483
      %v485 = vmul.f32 %v460, 1.442695
      %v486 = vpow.pop %v485
      %v487 = vmul.f32 %v462, 1.442695
      %v488 = vpow.pop %v487
      %v489 = vmul.f32 %v465, 1.442695
      %v490 = vpow.pop %v489
      %v491 = vmul.f32 %v467, 1.442695
      %v492 = vpow.pop %v491
      %v493 = vsub.f32 %v478, 1.0
      %v494 = vsub.f32 %v480, 1.0
      %v495 = vsub.f32 %v482, 1.0
      %v496 = vsub.f32 %v484, 1.0
      %v497 = vsub.f32 %v486, 1.0
      %v498 = vsub.f32 %v488, 1.0
      %v499 = vsub.f32 %v490, 1.0
      %v500 = vsub.f32 %v492, 1.0
      %v501 = vmul.f32 %v493, 1.6732632
      %v502 = vmul.f32 %v494, 1.6732632
      %v503 = vmul.f32 %v495, 1.6732632
      %v504 = vmul.f32 %v496, 1.6732632
      %v505 = vmul.f32 %v497, 1.6732632
      %v506 = vmul.f32 %v498, 1.6732632
      %v507 = vmul.f32 %v499, 1.6732632
      %v508 = vmul.f32 %v500, 1.6732632
      %v509 = vsel %vm469, %v450, %v501
      %v510 = vsel %vm470, %v452, %v502
      %v511 = vsel %vm471, %v455, %v503
      %v512 = vsel %vm472, %v457, %v504
      %v513 = vsel %vm473, %v460, %v505
      %v514 = vsel %vm474, %v462, %v506
      %v515 = vsel %vm475, %v465, %v507
      %v516 = vsel %vm476, %v467, %v508
      %v517 = vmul.f32 %v509, 1.050701
      %v518 = vmul.f32 %v510, 1.050701
      %v519 = vmul.f32 %v511, 1.050701
      %v520 = vmul.f32 %v512, 1.050701
      %v521 = vmul.f32 %v513, 1.050701
      %v522 = vmul.f32 %v514, 1.050701
      %v523 = vmul.f32 %v515, 1.050701
      %v524 = vmul.f32 %v516, 1.050701
      %v525 = vpack.c.bf16 %v518, %v517
      %v526 = vpack.c.bf16 %v520, %v519
      %v527 = vpack.c.bf16 %v522, %v521
      %v528 = vpack.c.bf16 %v524, %v523
      %v529 = vld [vmem:[%s3] sm:$0xf]
      %v530 = vld [vmem:[%s3 + $0x4] sm:$0xf]
      %v531 = vld [vmem:[%s3 + $0x8] sm:$0xf]
      %v532 = vld [vmem:[%s3 + $0xc] sm:$0xf]
      %v533 = vld [vmem:[%s3 + $0x10] sm:$0xf]
      %v534 = vld [vmem:[%s3 + $0x14] sm:$0xf]
      %v535 = vld [vmem:[%s3 + $0x18] sm:$0xf]
      %v536 = vld [vmem:[%s3 + $0x1c] sm:$0xf]
      %v537 = vld [vmem:[%s4] sm:$0x1]
      %v539 = vperm.slane %v537, 0
      %v549 = vunpack.c.l.b16 %v529
      %v550 = vunpack.c.l.b16 %v530
      %v551 = vunpack.c.l.b16 %v531
      %v552 = vunpack.c.l.b16 %v532
      %v553 = vunpack.c.l.b16 %v533
      %v554 = vunpack.c.l.b16 %v534
      %v555 = vunpack.c.l.b16 %v535
      %v556 = vunpack.c.l.b16 %v536
      %v557 = vpack.c.b16 %v550, %v549
      %v558 = vpack.c.b16 %v552, %v551
      %v559 = vpack.c.b16 %v554, %v553
      %v560 = vpack.c.b16 %v556, %v555
      %vm565 = vcmask 523264
      %v567 = vsel %vm565, %v525, 0
      %v570 = vsel %vm565, %v526, 0
      %v573 = vsel %vm565, %v527, 0
      %v576 = vsel %vm565, %v528, 0
      %578 = vmatpush.bf16.msra.mxu0 0
      %579 = vmatpush.bf16.msra.mxu0 0
      %580 = vmatpush.bf16.msra.mxu0 0
      %581 = vmatpush.bf16.msra.mxu0 0
      %582 = vmatpush.bf16.msra.mxu0 %v560
      %583 = vmatpush.bf16.msra.mxu0 %v559
      %584 = vmatpush.bf16.msra.mxu0 %v558
      %585 = vmatpush.bf16.msra.mxu0 %v557
      %586 = vmatmul.bf16.gmra.mxu0 %v567
      %v587 = vpop.f32.mrf.mxu0
      %v588 = vadd.f32 %v539, %v587
      %v589 = vpop.f32.mrf.mxu0
      %v590 = vadd.f32 %v539, %v589
      %591 = vmatmul.bf16.gmra.mxu0 %v570
      %v592 = vpop.f32.mrf.mxu0
      %v593 = vadd.f32 %v539, %v592
      %v594 = vpop.f32.mrf.mxu0
      %v595 = vadd.f32 %v539, %v594
      %596 = vmatmul.bf16.gmra.mxu0 %v573
      %v597 = vpop.f32.mrf.mxu0
      %v598 = vadd.f32 %v539, %v597
      %v599 = vpop.f32.mrf.mxu0
      %v600 = vadd.f32 %v539, %v599
      %601 = vmatmul.bf16.gmra.mxu0 %v576
      %v602 = vpop.f32.mrf.mxu0
      %v603 = vadd.f32 %v539, %v602
      %v604 = vpop.f32.mrf.mxu0
      %v605 = vadd.f32 %v539, %v604
      %606 = vdwg.mxu0
      %vm607 = vcmp.gt.f32.partialorder %v588, 0.0
      %vm608 = vcmp.gt.f32.partialorder %v590, 0.0
      %vm609 = vcmp.gt.f32.partialorder %v593, 0.0
      %vm610 = vcmp.gt.f32.partialorder %v595, 0.0
      %vm611 = vcmp.gt.f32.partialorder %v598, 0.0
      %vm612 = vcmp.gt.f32.partialorder %v600, 0.0
      %vm613 = vcmp.gt.f32.partialorder %v603, 0.0
      %vm614 = vcmp.gt.f32.partialorder %v605, 0.0
      %v615 = vmul.f32 %v588, 1.442695
      %v616 = vpow.pop %v615
      %v617 = vmul.f32 %v590, 1.442695
      %v618 = vpow.pop %v617
      %v619 = vmul.f32 %v593, 1.442695
      %v620 = vpow.pop %v619
      %v621 = vmul.f32 %v595, 1.442695
      %v622 = vpow.pop %v621
      %v623 = vmul.f32 %v598, 1.442695
      %v624 = vpow.pop %v623
      %v625 = vmul.f32 %v600, 1.442695
      %v626 = vpow.pop %v625
      %v627 = vmul.f32 %v603, 1.442695
      %v628 = vpow.pop %v627
      %v629 = vmul.f32 %v605, 1.442695
      %v630 = vpow.pop %v629
      %v631 = vsub.f32 %v616, 1.0
      %v632 = vsub.f32 %v618, 1.0
      %v633 = vsub.f32 %v620, 1.0
      %v634 = vsub.f32 %v622, 1.0
      %v635 = vsub.f32 %v624, 1.0
      %v636 = vsub.f32 %v626, 1.0
      %v637 = vsub.f32 %v628, 1.0
      %v638 = vsub.f32 %v630, 1.0
      %v639 = vmul.f32 %v631, 1.6732632
      %v640 = vmul.f32 %v632, 1.6732632
      %v641 = vmul.f32 %v633, 1.6732632
      %v642 = vmul.f32 %v634, 1.6732632
      %v643 = vmul.f32 %v635, 1.6732632
      %v644 = vmul.f32 %v636, 1.6732632
      %v645 = vmul.f32 %v637, 1.6732632
      %v646 = vmul.f32 %v638, 1.6732632
      %v647 = vsel %vm607, %v588, %v639
      %v648 = vsel %vm608, %v590, %v640
      %v649 = vsel %vm609, %v593, %v641
      %v650 = vsel %vm610, %v595, %v642
      %v651 = vsel %vm611, %v598, %v643
      %v652 = vsel %vm612, %v600, %v644
      %v653 = vsel %vm613, %v603, %v645
      %v654 = vsel %vm614, %v605, %v646
      %v655 = vmul.f32 %v647, 1.050701
      %v656 = vmul.f32 %v648, 1.050701
      %v657 = vmul.f32 %v649, 1.050701
      %v658 = vmul.f32 %v650, 1.050701
      %v659 = vmul.f32 %v651, 1.050701
      %v660 = vmul.f32 %v652, 1.050701
      %v661 = vmul.f32 %v653, 1.050701
      %v662 = vmul.f32 %v654, 1.050701
      %v663 = vpack.c.bf16 %v655, %v655
      %v664 = vpack.c.bf16 %v656, %v656
      %v665 = vpack.c.bf16 %v657, %v657
      %v666 = vpack.c.bf16 %v658, %v658
      %v667 = vpack.c.bf16 %v659, %v659
      %v668 = vpack.c.bf16 %v660, %v660
      %v669 = vpack.c.bf16 %v661, %v661
      %v670 = vpack.c.bf16 %v662, %v662
      %v671 = vld [vmem:[%s5] sm:$0xf]
      %v672 = vld [vmem:[%s5 + $0x4] sm:$0xf]
      %v673 = vld [vmem:[%s5 + $0x8] sm:$0xf]
      %v674 = vld [vmem:[%s5 + $0xc] sm:$0xf]
      %v675 = vld [vmem:[%s5 + $0x10] sm:$0xf]
      %v676 = vld [vmem:[%s5 + $0x14] sm:$0xf]
      %v677 = vld [vmem:[%s5 + $0x18] sm:$0xf]
      %v678 = vld [vmem:[%s5 + $0x1c] sm:$0xf]
      %s679 = sld [smem:[#allocation2]]
      %v680 = vstv %s679
      %v689 = vunpack.c.l.b16 %v663
      %v690 = vunpack.c.l.b16 %v664
      %v691 = vunpack.c.l.b16 %v665
      %v692 = vunpack.c.l.b16 %v666
      %v693 = vunpack.c.l.b16 %v667
      %v694 = vunpack.c.l.b16 %v668
      %v695 = vunpack.c.l.b16 %v669
      %v696 = vunpack.c.l.b16 %v670
      %v697 = vpack.c.b16 %v690, %v689
      %v698 = vpack.c.b16 %v692, %v691
      %v699 = vpack.c.b16 %v694, %v693
      %v700 = vpack.c.b16 %v696, %v695
      %v709 = vunpack.c.l.b16 %v671
      %v710 = vunpack.c.l.b16 %v672
      %v711 = vunpack.c.l.b16 %v673
      %v712 = vunpack.c.l.b16 %v674
      %v713 = vunpack.c.l.b16 %v675
      %v714 = vunpack.c.l.b16 %v676
      %v715 = vunpack.c.l.b16 %v677
      %v716 = vunpack.c.l.b16 %v678
      %v717 = vpack.c.b16 %v710, %v709
      %v718 = vpack.c.b16 %v712, %v711
      %v719 = vpack.c.b16 %v714, %v713
      %v720 = vpack.c.b16 %v716, %v715
      %v726 = vsel %vm565, %v697, 0
      %v729 = vsel %vm565, %v698, 0
      %v732 = vsel %vm565, %v699, 0
      %v735 = vsel %vm565, %v700, 0
      %737 = vmatpush.bf16.msra.mxu0 0
      %738 = vmatpush.bf16.msra.mxu0 0
      %739 = vmatpush.bf16.msra.mxu0 0
      %740 = vmatpush.bf16.msra.mxu0 0
      %741 = vmatpush.bf16.msra.mxu0 %v720
      %742 = vmatpush.bf16.msra.mxu0 %v719
      %743 = vmatpush.bf16.msra.mxu0 %v718
      %744 = vmatpush.bf16.msra.mxu0 %v717
      %745 = vmatmul.bf16.gmra.mxu0 %v726
      %v746 = vpop.f32.mrf.mxu0
      %v747 = vadd.f32 %v680, %v746
      %v748 = vpop.f32.mrf.mxu0
      %v749 = vadd.f32 %v680, %v748
      %750 = vmatmul.bf16.gmra.mxu0 %v729
      %v751 = vpop.f32.mrf.mxu0
      %v752 = vadd.f32 %v680, %v751
      %v753 = vpop.f32.mrf.mxu0
      %v754 = vadd.f32 %v680, %v753
      %755 = vmatmul.bf16.gmra.mxu0 %v732
      %v756 = vpop.f32.mrf.mxu0
      %v757 = vadd.f32 %v680, %v756
      %v758 = vpop.f32.mrf.mxu0
      %v759 = vadd.f32 %v680, %v758
      %760 = vmatmul.bf16.gmra.mxu0 %v735
      %v761 = vpop.f32.mrf.mxu0
      %v762 = vadd.f32 %v680, %v761
      %v763 = vpop.f32.mrf.mxu0
      %v764 = vadd.f32 %v680, %v763
      %765 = vdwg.mxu0
      %vm766 = vcmask 7168
      %v767 = vsel %vm766, %v747, -inf
      %v768 = vsel %vm766, %v749, -inf
      %v769 = vmax.f32 %v767, %v768
      %v770 = vrot.slane %v769, 4
      %v771 = vmax.f32 %v769, %v770
      %v772 = vrot.slane %v771, 2
      %v773 = vmax.f32 %v771, %v772
      %v774 = vrot.slane %v773, 1
      %v775 = vmax.f32 %v773, %v774
      %v776 = vsel %vm766, %v752, -inf
      %v777 = vsel %vm766, %v754, -inf
      %v778 = vmax.f32 %v776, %v777
      %v779 = vrot.slane %v778, 4
      %v780 = vmax.f32 %v778, %v779
      %v781 = vrot.slane %v780, 2
      %v782 = vmax.f32 %v780, %v781
      %v783 = vrot.slane %v782, 1
      %v784 = vmax.f32 %v782, %v783
      %v785 = vsel %vm766, %v757, -inf
      %v786 = vsel %vm766, %v759, -inf
      %v787 = vmax.f32 %v785, %v786
      %v788 = vrot.slane %v787, 4
      %v789 = vmax.f32 %v787, %v788
      %v790 = vrot.slane %v789, 2
      %v791 = vmax.f32 %v789, %v790
      %v792 = vrot.slane %v791, 1
      %v793 = vmax.f32 %v791, %v792
      %v794 = vsel %vm766, %v762, -inf
      %v795 = vsel %vm766, %v764, -inf
      %v796 = vmax.f32 %v794, %v795
      %v797 = vrot.slane %v796, 4
      %v798 = vmax.f32 %v796, %v797
      %v799 = vrot.slane %v798, 2
      %v800 = vmax.f32 %v798, %v799
      %v801 = vrot.slane %v800, 1
      %v802 = vmax.f32 %v800, %v801
      %v803 = vsub.f32 %v747, %v775
      %v804 = vsub.f32 %v749, %v775
      %v805 = vsub.f32 %v752, %v784
      %v806 = vsub.f32 %v754, %v784
      %v807 = vsub.f32 %v757, %v793
      %v808 = vsub.f32 %v759, %v793
      %v809 = vsub.f32 %v762, %v802
      %v810 = vsub.f32 %v764, %v802
      %v811 = vmul.f32 %v803, 1.442695
      %v812 = vpow.pop %v811
      %v813 = vmul.f32 %v804, 1.442695
      %v814 = vpow.pop %v813
      %v815 = vmul.f32 %v805, 1.442695
      %v816 = vpow.pop %v815
      %v817 = vmul.f32 %v806, 1.442695
      %v818 = vpow.pop %v817
      %v819 = vmul.f32 %v807, 1.442695
      %v820 = vpow.pop %v819
      %v821 = vmul.f32 %v808, 1.442695
      %v822 = vpow.pop %v821
      %v823 = vmul.f32 %v809, 1.442695
      %v824 = vpow.pop %v823
      %v825 = vmul.f32 %v810, 1.442695
      %v826 = vpow.pop %v825
      %v827 = vsel %vm766, %v812, 0.0
      %v828 = vsel %vm766, %v814, 0.0
      %v829 = vadd.f32 %v827, %v828
      %v830 = vrot.slane %v829, 4
      %v831 = vadd.f32 %v829, %v830
      %v832 = vrot.slane %v831, 2
      %v833 = vadd.f32 %v831, %v832
      %v834 = vrot.slane %v833, 1
      %v835 = vadd.f32 %v833, %v834
      %v836 = vsel %vm766, %v816, 0.0
      %v837 = vsel %vm766, %v818, 0.0
      %v838 = vadd.f32 %v836, %v837
      %v839 = vrot.slane %v838, 4
      %v840 = vadd.f32 %v838, %v839
      %v841 = vrot.slane %v840, 2
      %v842 = vadd.f32 %v840, %v841
      %v843 = vrot.slane %v842, 1
      %v844 = vadd.f32 %v842, %v843
      %v845 = vsel %vm766, %v820, 0.0
      %v846 = vsel %vm766, %v822, 0.0
      %v847 = vadd.f32 %v845, %v846
      %v848 = vrot.slane %v847, 4
      %v849 = vadd.f32 %v847, %v848
      %v850 = vrot.slane %v849, 2
      %v851 = vadd.f32 %v849, %v850
      %v852 = vrot.slane %v851, 1
      %v853 = vadd.f32 %v851, %v852
      %v854 = vsel %vm766, %v824, 0.0
      %v855 = vsel %vm766, %v826, 0.0
      %v856 = vadd.f32 %v854, %v855
      %v857 = vrot.slane %v856, 4
      %v858 = vadd.f32 %v856, %v857
      %v859 = vrot.slane %v858, 2
      %v860 = vadd.f32 %v858, %v859
      %v861 = vrot.slane %v860, 1
      %v862 = vadd.f32 %v860, %v861
      %v863 = vrcp.pop %v835
      %v864 = vrcp.pop %v844
      %v865 = vrcp.pop %v853
      %v866 = vrcp.pop %v862
      %v867 = vmul.f32 %v812, %v863
      %v868 = vmul.f32 %v814, %v863
      %v869 = vmul.f32 %v816, %v864
      %v870 = vmul.f32 %v818, %v864
      %v871 = vmul.f32 %v820, %v865
      %v872 = vmul.f32 %v822, %v865
      %v873 = vmul.f32 %v824, %v866
      %v874 = vmul.f32 %v826, %v866
      %v875 = vpack.c.bf16 %v867, %v867
      %v876 = vpack.c.bf16 %v868, %v868
      %v877 = vpack.c.bf16 %v869, %v869
      %v878 = vpack.c.bf16 %v870, %v870
      %v879 = vpack.c.bf16 %v871, %v871
      %v880 = vpack.c.bf16 %v872, %v872
      %v881 = vpack.c.bf16 %v873, %v873
      %v882 = vpack.c.bf16 %v874, %v874
      %v885 = vunpack.c.l.b16 %v875
      %v886 = vunpack.c.l.b16 %v876
      %v887 = vpack.c.b16 %v886, %v885
      %889 = vxpose.xlu0.c.b16.start [1/8] %v887, 128
      %890 = vxpose.xlu0.c.b16.cont [2/8] 0, 128
      %891 = vxpose.xlu0.c.b16.cont [3/8] 0, 128
      %892 = vxpose.xlu0.c.b16.cont [4/8] 0, 128
      %893 = vxpose.xlu0.c.b16.cont [5/8] 0, 128
      %894 = vxpose.xlu0.c.b16.cont [6/8] 0, 128
      %895 = vxpose.xlu0.c.b16.cont [7/8] 0, 128
      %896 = vxpose.xlu0.c.b16.end [8/8] 0, 128
      %v897 = vpop.trf.xlu0
      %v898 = vpop.trf.xlu0
      %v899 = vpop.trf.xlu0
      %v900 = vpop.trf.xlu0
      %v901 = vpop.trf.xlu0
      %v902 = vpop.trf.xlu0
      %v903 = vpop.trf.xlu0
      %v904 = vpop.trf.xlu0
      %vm906 = vcmask 130048
      %v908 = vsel %vm906, %v897, 0
      %910 = vmatpush.bf16.msra.mxu0 0
      %911 = vmatpush.bf16.msra.mxu0 0
      %912 = vmatpush.bf16.msra.mxu0 0
      %913 = vmatpush.bf16.msra.mxu0 0
      %914 = vmatpush.bf16.msra.mxu0 0
      %915 = vmatpush.bf16.msra.mxu0 0
      %916 = vmatpush.bf16.msra.mxu0 0
      %917 = vmatpush.bf16.msra.mxu0 %v697
      %918 = vmatmul.bf16.gmra.mxu0 %v908
      %v919 = vpop.f32.mrf.mxu0
      %v920 = vadd.f32 0.0, %v919
      %v921 = vpop.f32.mrf.mxu0
      %922 = vdwg.mxu0
      %v925 = vunpack.c.l.b16 %v877
      %v926 = vunpack.c.l.b16 %v878
      %v927 = vpack.c.b16 %v926, %v925
      %929 = vxpose.xlu0.c.b16.start [1/8] %v927, 128
      %930 = vxpose.xlu0.c.b16.cont [2/8] 0, 128
      %931 = vxpose.xlu0.c.b16.cont [3/8] 0, 128
      %932 = vxpose.xlu0.c.b16.cont [4/8] 0, 128
      %933 = vxpose.xlu0.c.b16.cont [5/8] 0, 128
      %934 = vxpose.xlu0.c.b16.cont [6/8] 0, 128
      %935 = vxpose.xlu0.c.b16.cont [7/8] 0, 128
      %936 = vxpose.xlu0.c.b16.end [8/8] 0, 128
      %v937 = vpop.trf.xlu0
      %v938 = vpop.trf.xlu0
      %v939 = vpop.trf.xlu0
      %v940 = vpop.trf.xlu0
      %v941 = vpop.trf.xlu0
      %v942 = vpop.trf.xlu0
      %v943 = vpop.trf.xlu0
      %v944 = vpop.trf.xlu0
      %v947 = vsel %vm906, %v937, 0
      %949 = vmatpush.bf16.msra.mxu0 0
      %950 = vmatpush.bf16.msra.mxu0 0
      %951 = vmatpush.bf16.msra.mxu0 0
      %952 = vmatpush.bf16.msra.mxu0 0
      %953 = vmatpush.bf16.msra.mxu0 0
      %954 = vmatpush.bf16.msra.mxu0 0
      %955 = vmatpush.bf16.msra.mxu0 0
      %956 = vmatpush.bf16.msra.mxu0 %v698
      %957 = vmatmul.bf16.gmra.mxu0 %v947
      %v958 = vpop.f32.mrf.mxu0
      %v959 = vadd.f32 0.0, %v958
      %v960 = vpop.f32.mrf.mxu0
      %961 = vdwg.mxu0
      %v964 = vunpack.c.l.b16 %v879
      %v965 = vunpack.c.l.b16 %v880
      %v966 = vpack.c.b16 %v965, %v964
      %968 = vxpose.xlu0.c.b16.start [1/8] %v966, 128
      %969 = vxpose.xlu0.c.b16.cont [2/8] 0, 128
      %970 = vxpose.xlu0.c.b16.cont [3/8] 0, 128
      %971 = vxpose.xlu0.c.b16.cont [4/8] 0, 128
      %972 = vxpose.xlu0.c.b16.cont [5/8] 0, 128
      %973 = vxpose.xlu0.c.b16.cont [6/8] 0, 128
      %974 = vxpose.xlu0.c.b16.cont [7/8] 0, 128
      %975 = vxpose.xlu0.c.b16.end [8/8] 0, 128
      %v976 = vpop.trf.xlu0
      %v977 = vpop.trf.xlu0
      %v978 = vpop.trf.xlu0
      %v979 = vpop.trf.xlu0
      %v980 = vpop.trf.xlu0
      %v981 = vpop.trf.xlu0
      %v982 = vpop.trf.xlu0
      %v983 = vpop.trf.xlu0
      %v986 = vsel %vm906, %v976, 0
      %988 = vmatpush.bf16.msra.mxu0 0
      %989 = vmatpush.bf16.msra.mxu0 0
      %990 = vmatpush.bf16.msra.mxu0 0
      %991 = vmatpush.bf16.msra.mxu0 0
      %992 = vmatpush.bf16.msra.mxu0 0
      %993 = vmatpush.bf16.msra.mxu0 0
      %994 = vmatpush.bf16.msra.mxu0 0
      %995 = vmatpush.bf16.msra.mxu0 %v699
      %996 = vmatmul.bf16.gmra.mxu0 %v986
      %v997 = vpop.f32.mrf.mxu0
      %v998 = vadd.f32 0.0, %v997
      %v999 = vpop.f32.mrf.mxu0
      %1000 = vdwg.mxu0
      %v1003 = vunpack.c.l.b16 %v881
      %v1004 = vunpack.c.l.b16 %v882
      %v1005 = vpack.c.b16 %v1004, %v1003
      %1007 = vxpose.xlu0.c.b16.start [1/8] %v1005, 128
      %1008 = vxpose.xlu0.c.b16.cont [2/8] 0, 128
      %1009 = vxpose.xlu0.c.b16.cont [3/8] 0, 128
      %1010 = vxpose.xlu0.c.b16.cont [4/8] 0, 128
      %1011 = vxpose.xlu0.c.b16.cont [5/8] 0, 128
      %1012 = vxpose.xlu0.c.b16.cont [6/8] 0, 128
      %1013 = vxpose.xlu0.c.b16.cont [7/8] 0, 128
      %1014 = vxpose.xlu0.c.b16.end [8/8] 0, 128
      %v1015 = vpop.trf.xlu0
      %v1016 = vpop.trf.xlu0
      %v1017 = vpop.trf.xlu0
      %v1018 = vpop.trf.xlu0
      %v1019 = vpop.trf.xlu0
      %v1020 = vpop.trf.xlu0
      %v1021 = vpop.trf.xlu0
      %v1022 = vpop.trf.xlu0
      %v1025 = vsel %vm906, %v1015, 0
      %1027 = vmatpush.bf16.msra.mxu0 0
      %1028 = vmatpush.bf16.msra.mxu0 0
      %1029 = vmatpush.bf16.msra.mxu0 0
      %1030 = vmatpush.bf16.msra.mxu0 0
      %1031 = vmatpush.bf16.msra.mxu0 0
      %1032 = vmatpush.bf16.msra.mxu0 0
      %1033 = vmatpush.bf16.msra.mxu0 0
      %1034 = vmatpush.bf16.msra.mxu0 %v700
      %1035 = vmatmul.bf16.gmra.mxu0 %v1025
      %v1036 = vpop.f32.mrf.mxu0
      %v1037 = vadd.f32 0.0, %v1036
      %v1038 = vpop.f32.mrf.mxu0
      %1039 = vdwg.mxu0
      %v1040 = vpack.c.bf16 %v920, %v920
      %v1041 = vpack.c.bf16 %v959, %v959
      %v1042 = vpack.c.bf16 %v998, %v998
      %v1043 = vpack.c.bf16 %v1037, %v1037
      %v1044 = vld [vmem:[%s7] sm:$0xf]
      %v1045 = vld [vmem:[%s7 + $0x4] sm:$0xf]
      %v1046 = vld [vmem:[%s7 + $0x8] sm:$0xf]
      %v1047 = vld [vmem:[%s7 + $0xc] sm:$0xf]
      %v1048 = vld [vmem:[%s7 + $0x10] sm:$0xf]
      %v1049 = vld [vmem:[%s7 + $0x14] sm:$0xf]
      %v1050 = vld [vmem:[%s7 + $0x18] sm:$0xf]
      %v1051 = vld [vmem:[%s7 + $0x1c] sm:$0xf]
      %v1052 = vld [vmem:[%s8] sm:$0x1]
      %v1054 = vperm.slane %v1052, 0
      %v1060 = vunpack.c.l.b16 %v1040
      %v1061 = vunpack.c.l.b16 %v1041
      %v1062 = vunpack.c.l.b16 %v1042
      %v1063 = vunpack.c.l.b16 %v1043
      %v1064 = vrot.slane %v1061, 7
      %vm1065 = vcmask 1041409
      %v1066 = vsel %vm1065, %v1064, %v1060
      %v1067 = vrot.slane %v1062, 6
      %vm1068 = vcmask 1042434
      %v1069 = vsel %vm1068, %v1067, %v1066
      %v1070 = vrot.slane %v1063, 5
      %vm1071 = vcmask 1043459
      %v1072 = vsel %vm1071, %v1070, %v1069
      %v1073 = vpack.c.b16 %v1072, %v1072
      %v1082 = vunpack.c.l.b16 %v1044
      %v1083 = vunpack.c.l.b16 %v1045
      %v1084 = vunpack.c.l.b16 %v1046
      %v1085 = vunpack.c.l.b16 %v1047
      %v1086 = vunpack.c.l.b16 %v1048
      %v1087 = vunpack.c.l.b16 %v1049
      %v1088 = vunpack.c.l.b16 %v1050
      %v1089 = vunpack.c.l.b16 %v1051
      %v1090 = vpack.c.b16 %v1083, %v1082
      %v1091 = vpack.c.b16 %v1085, %v1084
      %v1092 = vpack.c.b16 %v1087, %v1086
      %v1093 = vpack.c.b16 %v1089, %v1088
      %v1099 = vsel %vm565, %v1073, 0
      %1101 = vmatpush.bf16.msra.mxu0 0
      %1102 = vmatpush.bf16.msra.mxu0 0
      %1103 = vmatpush.bf16.msra.mxu0 0
      %1104 = vmatpush.bf16.msra.mxu0 0
      %1105 = vmatpush.bf16.msra.mxu0 %v1093
      %1106 = vmatpush.bf16.msra.mxu0 %v1092
      %1107 = vmatpush.bf16.msra.mxu0 %v1091
      %1108 = vmatpush.bf16.msra.mxu0 %v1090
      %1109 = vmatmul.bf16.gmra.mxu0 %v1099
      %v1110 = vpop.f32.mrf.mxu0
      %v1111 = vadd.f32 %v1054, %v1110
      %v1112 = vpop.f32.mrf.mxu0
      %1113 = vdwg.mxu0
      %vm1114 = vcmp.gt.f32.partialorder %v1111, 0.0
      %v1115 = vmul.f32 %v1111, 1.442695
      %v1116 = vpow.pop %v1115
      %v1117 = vsub.f32 %v1116, 1.0
      %v1118 = vmul.f32 %v1117, 1.6732632
      %v1119 = vsel %vm1114, %v1111, %v1118
      %v1120 = vmul.f32 %v1119, 1.050701
      %v1121 = vpack.c.bf16 %v1120, %v1120
      %v1122 = vld [vmem:[%s9] sm:$0xf]
      %v1123 = vld [vmem:[%s9 + $0x4] sm:$0xf]
      %v1124 = vld [vmem:[%s9 + $0x8] sm:$0xf]
      %v1125 = vld [vmem:[%s9 + $0xc] sm:$0xf]
      %s1126 = sld [smem:[#allocation3]]
      %v1127 = vstv %s1126
      %v1132 = vunpack.c.l.b16 %v1122
      %v1133 = vunpack.c.l.b16 %v1123
      %v1134 = vunpack.c.l.b16 %v1124
      %v1135 = vunpack.c.l.b16 %v1125
      %v1136 = vpack.c.b16 %v1133, %v1132
      %v1137 = vpack.c.b16 %v1135, %v1134
      %vm1140 = vcmask 261120
      %v1142 = vsel %vm1140, %v1121, 0
      %1144 = vmatpush.bf16.msra.mxu0 0
      %1145 = vmatpush.bf16.msra.mxu0 0
      %1146 = vmatpush.bf16.msra.mxu0 0
      %1147 = vmatpush.bf16.msra.mxu0 0
      %1148 = vmatpush.bf16.msra.mxu0 0
      %1149 = vmatpush.bf16.msra.mxu0 0
      %1150 = vmatpush.bf16.msra.mxu0 %v1137
      %1151 = vmatpush.bf16.msra.mxu0 %v1136
      %1152 = vmatmul.bf16.gmra.mxu0 %v1142
      %v1153 = vpop.f32.mrf.mxu0
      %v1154 = vadd.f32 %v1127, %v1153
      %v1155 = vpop.f32.mrf.mxu0
      %1156 = vdwg.mxu0
      %v1157 = vxor.u32 %v1154, 2147483648
      %v1158 = vmul.f32 %v1157, 1.442695
      %v1159 = vpow.pop %v1158
      %v1160 = vadd.f32 %v1159, 1.0
      %v1161 = vrcp.pop %v1160
      %v1162 = vmul.f32 %v1160, %v1161
      %v1163 = vsub.f32 1.0, %v1162
      %v1164 = vmul.f32 %v1161, %v1163
      %v1165 = vadd.f32 %v1161, %v1164
      %vm1166 = vweird.f32 %v1160
      %vm1167 = vweird.f32 %v1161
      %vm1168 = vmor %vm1166, %vm1167
      %v1169 = vsel %vm1168, %v1161, %v1165
      %v1170 = vand.u32 2147483647, %v1160
      %vm1171 = vcmp.eq.f32.partialorder %v1170, 8.507059e+37
      %v1172 = vand.u32 %v1160, 2147483648
      %v1173 = vor.u32 1.1754944e-38, %v1172
      %v1174 = vsel %vm1171, %v1173, %v1169
      %v1175 = vmul.f32 1.0, %v1174
      %vm1176 = vcmask 3072
      %1177 = vst.msk [vmem:[%s388] sm:$0xf] %vm1176, %v1175
      %p1178 = scmp.lt.s32.totalorder %s24, 1
      %s1179 = scalar_select %p1178, %s24, 1
      %s1180 = smul.addr %s1179, 4
      %s1181 = scalar_lea.vmem %s11, %s1180
      // Predicated region
      $region65: #{tpu_custom_call.1} parent=63 // pred_check
        %p1182 = pneg %p278
      $region66: #{tpu_custom_call.1} parent=63 // pred_check_branch
        %1184 = sbr.rel (%p1182) target = $region68
      $region67: #{tpu_custom_call.1} parent=63 // pred_region
        _
      $region68: #{tpu_custom_call.1} parent=63 // pred_fallthru
        _
    $region64: #{tpu_custom_call.1} parent=5 // pred_fallthru
      _
    %p1185 = scmp.le.s32.totalorder 2, %s19
    // Predicated region
    $region69: #{tpu_custom_call.1} parent=5 // pred_check
      %p1186 = pneg %p1185
    $region70: #{tpu_custom_call.1} parent=5 // pred_check_branch
      %1188 = sbr.rel (%p1186) target = $region72
    $region71: #{tpu_custom_call.1} parent=5 // pred_region
      %s1189 = ssub.s32 %s19, 2
      // Predicated region
      $region73: #{tpu_custom_call.1} parent=71 // pred_check
        %p1190 = pneg %p284
      $region74: #{tpu_custom_call.1} parent=71 // pred_check_branch
        %1192 = sbr.rel (%p1190) target = $region76
      $region75: #{tpu_custom_call.1} parent=71 // pred_region
        %p1193 = scmp.lt.s32.totalorder %s25, 1
        %s1194 = scalar_select %p1193, %s25, 1
        %s1195 = smul.addr %s1194, 4
        %s1196 = scalar_lea.vmem %s11, %s1195
      $region76: #{tpu_custom_call.1} parent=71 // pred_fallthru
        _
    $region72: #{tpu_custom_call.1} parent=5 // pred_fallthru
      _
  $region6: #{tpu_custom_call.1} parent=0 // loop_footer
    %s23 = sadd.s32 1, %s19
  $region7: #{tpu_custom_call.1} parent=0 // loop_footer_branch
    %18 = sbr.rel target = $region3
  $region8: #{tpu_custom_call.1} parent=0 // loop_exit
    _

</llo_original>
